<compile_context>
chip_gen: v5e
topology: v5e:2x2
jax: 0.10.0
libtpu: 0.0.40
codegen_flags: <defaults>
</compile_context>

<pallas_src>
import functools
import math

import jax
import jax.numpy as jnp
import numpy as np
from jax import lax
from jax.experimental import pallas as pl
from jax.experimental.pallas import tpu as pltpu


# ---------------------------------------------------------------------------
# Path A: fully fused MHA forward in a single pallas_call, grid = (B,).
# ---------------------------------------------------------------------------
def _mha_fused_kernel(q_ref, k_ref, v_ref, wq_ref, wk_ref, wv_ref, wo_ref, bo_ref,
                      y_ref, attn_ref, ctx_ref, *, head_num, d_k):
    scale = 1.0 / math.sqrt(d_k)

    # Per-batch projections on the MXU with f32 accumulation: (S, F) @ (F, F).
    q = jnp.dot(q_ref[0], wq_ref[...], preferred_element_type=jnp.float32) * scale
    k = jnp.dot(k_ref[0], wk_ref[...], preferred_element_type=jnp.float32)
    v = jnp.dot(v_ref[0], wv_ref[...], preferred_element_type=jnp.float32)

    # Contract last dims of q_h and k_h directly -> (S, S); no explicit k.T.
    dims = (((1,), (1,)), ((), ()))

    p_sum = None
    for h in range(head_num):  # static loop: head_num is a compile-time constant
        lo = h * d_k
        q_h = q[:, lo:lo + d_k]
        k_h = k[:, lo:lo + d_k]
        v_h = v[:, lo:lo + d_k]

        scores = lax.dot_general(q_h, k_h, dims, preferred_element_type=jnp.float32)
        m = jnp.max(scores, axis=-1, keepdims=True)
        e = jnp.exp(scores - m)
        p = e / jnp.sum(e, axis=-1, keepdims=True)  # exact division: tight tolerances

        # Stash per-head context in VMEM scratch so the out-projection below is one
        # full-width matmul and y gets a single store.
        ctx_ref[:, lo:lo + d_k] = jnp.dot(p, v_h, preferred_element_type=jnp.float32)
        p_sum = p if p_sum is None else p_sum + p

    # Fused output projection (+ bias); single write of y and of the head-mean map.
    y = jnp.dot(ctx_ref[...], wo_ref[...], preferred_element_type=jnp.float32) + bo_ref[...]
    y_ref[0] = y.astype(y_ref.dtype)
    attn_ref[0] = (p_sum * (1.0 / head_num)).astype(attn_ref.dtype)


def mha_fused(query, key, value, params, head_num):
    b, s, f = query.shape
    d_k = f // head_num

    io_spec = pl.BlockSpec((1, s, f), lambda bi: (bi, 0, 0))
    w_spec = pl.BlockSpec((f, f), lambda bi: (0, 0))       # constant index: fetched once
    b_spec = pl.BlockSpec((1, f), lambda bi: (0, 0))
    attn_spec = pl.BlockSpec((1, s, s), lambda bi: (bi, 0, 0))

    cost = pl.CostEstimate(
        flops=b * (8 * s * f * f + 4 * head_num * s * s * d_k + 6 * head_num * s * s),
        transcendentals=b * head_num * s * s,
        bytes_accessed=4 * (4 * b * s * f + 4 * f * f + f + b * s * s),
    )

    return pl.pallas_call(
        functools.partial(_mha_fused_kernel, head_num=head_num, d_k=d_k),
        grid=(b,),
        in_specs=[io_spec, io_spec, io_spec, w_spec, w_spec, w_spec, w_spec, b_spec],
        out_specs=(io_spec, attn_spec),
        out_shape=(
            jax.ShapeDtypeStruct((b, s, f), query.dtype),
            jax.ShapeDtypeStruct((b, s, s), jnp.float32),
        ),
        scratch_shapes=[pltpu.VMEM((s, f), jnp.float32)],
        compiler_params=pltpu.CompilerParams(dimension_semantics=("parallel",)),
        cost_estimate=cost,
    )(query, key, value, params["w_q"], params["w_k"], params["w_v"],
      params["w_o"], params["b_o"].reshape(1, f))


def _fused_path_vmem_bytes(b, s, f):
    # Rough f32 double-buffered estimate for the fused path's VMEM footprint.
    per_step = 4 * s * f + s * s          # q,k,v in + y out + attn out
    weights = 4 * f * f + f               # constant blocks
    scratch = s * f
    return 4 * (2 * per_step + 2 * weights + scratch)


# ---------------------------------------------------------------------------
# Path B (fallback for large F): tiled linear projections + per-batch attention.
# y = x @ W^T [+ b]; weights passed pre-transposed as (F_in, F_out).
# ---------------------------------------------------------------------------
def _pick_tile(dim, preferred=(512, 256, 128)):
    for t in preferred:
        if t <= dim and dim % t == 0:
            return t
    return dim


def _linear_kernel(x_ref, w_ref, o_ref, acc_ref):
    @pl.when(pl.program_id(2) == 0)
    def _():
        acc_ref[...] = jnp.zeros_like(acc_ref)

    acc_ref[...] += jnp.dot(x_ref[...], w_ref[...], preferred_element_type=jnp.float32)

    @pl.when(pl.program_id(2) == pl.num_programs(2) - 1)
    def _():
        o_ref[...] = acc_ref[...].astype(o_ref.dtype)


def _linear_bias_kernel(x_ref, w_ref, b_ref, o_ref, acc_ref):
    @pl.when(pl.program_id(2) == 0)
    def _():
        acc_ref[...] = jnp.zeros_like(acc_ref)

    acc_ref[...] += jnp.dot(x_ref[...], w_ref[...], preferred_element_type=jnp.float32)

    @pl.when(pl.program_id(2) == pl.num_programs(2) - 1)
    def _():
        o_ref[...] = (acc_ref[...] + b_ref[...]).astype(o_ref.dtype)


def linear(x2d, w_t, bias=None):
    m, k = x2d.shape
    k2, n = w_t.shape
    assert k == k2
    tm, tk, tn = _pick_tile(m), _pick_tile(k), _pick_tile(n)
    grid = (m // tm, n // tn, k // tk)  # reduction (K) axis last

    x_spec = pl.BlockSpec((tm, tk), lambda i, j, kk: (i, kk))
    w_spec = pl.BlockSpec((tk, tn), lambda i, j, kk: (kk, j))
    o_spec = pl.BlockSpec((tm, tn), lambda i, j, kk: (i, j))

    itemsize = jnp.dtype(x2d.dtype).itemsize
    cost = pl.CostEstimate(
        flops=2 * m * n * k,
        transcendentals=0,
        bytes_accessed=itemsize * (m * k + k * n + m * n),
    )
    params = pltpu.CompilerParams(
        dimension_semantics=("parallel", "parallel", "arbitrary")
    )
    out_shape = jax.ShapeDtypeStruct((m, n), x2d.dtype)
    scratch = [pltpu.VMEM((tm, tn), jnp.float32)]

    if bias is None:
        return pl.pallas_call(
            _linear_kernel,
            grid=grid,
            in_specs=[x_spec, w_spec],
            out_specs=o_spec,
            out_shape=out_shape,
            scratch_shapes=scratch,
            compiler_params=params,
            cost_estimate=cost,
        )(x2d, w_t)

    b_spec = pl.BlockSpec((1, tn), lambda i, j, kk: (0, j))
    return pl.pallas_call(
        _linear_bias_kernel,
        grid=grid,
        in_specs=[x_spec, w_spec, b_spec],
        out_specs=o_spec,
        out_shape=out_shape,
        scratch_shapes=scratch,
        compiler_params=params,
        cost_estimate=cost,
    )(x2d, w_t, bias.reshape(1, n))


def _fused_attn_kernel(q_ref, k_ref, v_ref, o_ref, attn_ref, *, head_num, d_k):
    scale = 1.0 / math.sqrt(d_k)
    dims = (((1,), (1,)), ((), ()))

    p_sum = None
    for h in range(head_num):
        lo = h * d_k
        q_h = q_ref[0, :, lo:lo + d_k].astype(jnp.float32) * scale
        k_h = k_ref[0, :, lo:lo + d_k].astype(jnp.float32)
        v_h = v_ref[0, :, lo:lo + d_k].astype(jnp.float32)

        scores = lax.dot_general(q_h, k_h, dims, preferred_element_type=jnp.float32)
        m = jnp.max(scores, axis=-1, keepdims=True)
        e = jnp.exp(scores - m)
        p = e / jnp.sum(e, axis=-1, keepdims=True)

        ctx_h = jnp.dot(p, v_h, preferred_element_type=jnp.float32)
        o_ref[0, :, lo:lo + d_k] = ctx_h.astype(o_ref.dtype)
        p_sum = p if p_sum is None else p_sum + p

    attn_ref[0] = (p_sum * (1.0 / head_num)).astype(attn_ref.dtype)


def fused_attention(q, k, v, head_num):
    b, s, f = q.shape
    d_k = f // head_num

    io_spec = pl.BlockSpec((1, s, f), lambda bi: (bi, 0, 0))
    attn_spec = pl.BlockSpec((1, s, s), lambda bi: (bi, 0, 0))

    cost = pl.CostEstimate(
        flops=4 * b * head_num * s * s * d_k + 6 * b * head_num * s * s,
        transcendentals=b * head_num * s * s,
        bytes_accessed=4 * (4 * b * s * f + b * s * s),
    )

    return pl.pallas_call(
        functools.partial(_fused_attn_kernel, head_num=head_num, d_k=d_k),
        grid=(b,),
        in_specs=[io_spec, io_spec, io_spec],
        out_specs=(io_spec, attn_spec),
        out_shape=(
            jax.ShapeDtypeStruct((b, s, f), q.dtype),
            jax.ShapeDtypeStruct((b, s, s), jnp.float32),
        ),
        compiler_params=pltpu.CompilerParams(dimension_semantics=("parallel",)),
        cost_estimate=cost,
    )(q, k, v)


# ---------------------------------------------------------------------------
# Module wrapper (parameter handling; no wrapper-side transposes).
# ---------------------------------------------------------------------------
def init_params(key, input_size):
    keys = jax.random.split(key, 5)
    bound = 1.0 / math.sqrt(input_size)

    def u(k, shape):
        return jax.random.uniform(k, shape, jnp.float32, -bound, bound)

    # Weights stored as (F_in, F_out), i.e. already the transpose of torch's (out, in).
    return {
        "w_q": u(keys[0], (input_size, input_size)),
        "w_k": u(keys[1], (input_size, input_size)),
        "w_v": u(keys[2], (input_size, input_size)),
        "w_o": u(keys[3], (input_size, input_size)),
        "b_o": u(keys[4], (input_size,)),
    }


def multi_head_attn_forward(params, query, key, value, head_num):
    bsz, seq, feat = query.shape

    # Fully fused single-kernel path whenever weights + per-batch blocks fit VMEM.
    if _fused_path_vmem_bytes(bsz, seq, feat) <= 12 * 1024 * 1024:
        return mha_fused(query, key, value, params, head_num)

    # Fallback: tiled projections + per-batch fused attention.
    q = linear(query.reshape(bsz * seq, feat), params["w_q"]).reshape(bsz, seq, feat)
    k = linear(key.reshape(bsz * seq, feat), params["w_k"]).reshape(bsz, seq, feat)
    v = linear(value.reshape(bsz * seq, feat), params["w_v"]).reshape(bsz, seq, feat)
    ctx, attn_mean = fused_attention(q, k, v, head_num)
    y = linear(ctx.reshape(bsz * seq, feat), params["w_o"], params["b_o"])
    return y.reshape(bsz, seq, feat), attn_mean


# Pure-JAX reference for verification.
def reference_forward(params, query, key, value, head_num):
    bsz, seq, feat = query.shape
    d_k = feat // head_num

    def proj(x, w):
        return (x.reshape(bsz * seq, feat) @ w).reshape(
            bsz, seq, head_num, d_k
        ).transpose(0, 2, 1, 3)

    q, k, v = proj(query, params["w_q"]), proj(key, params["w_k"]), proj(value, params["w_v"])
    scores = jnp.einsum("bhqd,bhkd->bhqk", q, k) / math.sqrt(d_k)
    p = jax.nn.softmax(scores, axis=-1)
    ctx = jnp.einsum("bhqk,bhkd->bhqd", p, v)
    ctx = ctx.transpose(0, 2, 1, 3).reshape(bsz * seq, feat)
    y = (ctx @ params["w_o"] + params["b_o"]).reshape(bsz, seq, feat)
    return y, p.mean(axis=1)


if __name__ == "__main__":
    B, S, F, H = 2, 8, 32, 4
    root = jax.random.PRNGKey(0)
    kx, kp = jax.random.split(root)

    x = jax.random.normal(kx, (B, S, F), jnp.float32)
    params = init_params(kp, F)

    # Self-attention: query = key = value = x
    y, attn = multi_head_attn_forward(params, x, x, x, H)
    jax.block_until_ready((y, attn))

    y_ref, attn_ref = reference_forward(params, x, x, x, H)
    np.testing.assert_allclose(np.asarray(y), np.asarray(y_ref), atol=1e-4, rtol=1e-4)
    np.testing.assert_allclose(np.asarray(attn), np.asarray(attn_ref), atol=1e-5, rtol=1e-5)
    assert y.shape == (B, S, F) and attn.shape == (B, S, S)

    print("KERNEL_OK")
</pallas_src>

<mosaic_0001>
module attributes {stable_mosaic.version = 11 : i64} {
  func.func @_mha_fused_kernel(%arg0: i32, %arg1: memref<1x8x32xf32, #tpu.memory_space<vmem>>, %arg2: memref<1x8x32xf32, #tpu.memory_space<vmem>>, %arg3: memref<1x8x32xf32, #tpu.memory_space<vmem>>, %arg4: memref<32x32xf32, #tpu.memory_space<vmem>>, %arg5: memref<32x32xf32, #tpu.memory_space<vmem>>, %arg6: memref<32x32xf32, #tpu.memory_space<vmem>>, %arg7: memref<32x32xf32, #tpu.memory_space<vmem>>, %arg8: memref<1x32xf32, #tpu.memory_space<vmem>>, %arg9: memref<1x8x32xf32, #tpu.memory_space<vmem>>, %arg10: memref<1x8x8xf32, #tpu.memory_space<vmem>>, %arg11: memref<8x32xf32, #tpu.memory_space<vmem>>) attributes {dimension_semantics = [#tpu.dimension_semantics<parallel>], iteration_bounds = array<i64: 2>, scalar_prefetch = 0 : i64, scratch_operands = 1 : i64, tpu.core_type = #tpu.core_type<tc>, window_params = [{transform_indices = @transform_0, window_bounds = array<i64: 1, 8, 32>}, {transform_indices = @transform_1, window_bounds = array<i64: 1, 8, 32>}, {transform_indices = @transform_2, window_bounds = array<i64: 1, 8, 32>}, {pipeline_mode = #tpu.pipeline_mode<synchronous>, transform_indices = @transform_3, window_bounds = array<i64: 32, 32>}, {pipeline_mode = #tpu.pipeline_mode<synchronous>, transform_indices = @transform_4, window_bounds = array<i64: 32, 32>}, {pipeline_mode = #tpu.pipeline_mode<synchronous>, transform_indices = @transform_5, window_bounds = array<i64: 32, 32>}, {pipeline_mode = #tpu.pipeline_mode<synchronous>, transform_indices = @transform_6, window_bounds = array<i64: 32, 32>}, {pipeline_mode = #tpu.pipeline_mode<synchronous>, transform_indices = @transform_7, window_bounds = array<i64: 1, 32>}, {transform_indices = @transform_8, window_bounds = array<i64: 1, 8, 32>}, {transform_indices = @transform_9, window_bounds = array<i64: 1, 8, 8>}]} {
    %c0 = arith.constant 0 : index
    %c0_0 = arith.constant 0 : index
    %c0_1 = arith.constant 0 : index
    %0 = vector.load %arg1[%c0, %c0_0, %c0_1] : memref<1x8x32xf32, #tpu.memory_space<vmem>>, vector<1x8x32xf32>
    %1 = vector.shape_cast %0 : vector<1x8x32xf32> to vector<8x32xf32>
    %c0_2 = arith.constant 0 : index
    %c0_3 = arith.constant 0 : index
    %2 = vector.load %arg4[%c0_2, %c0_3] : memref<32x32xf32, #tpu.memory_space<vmem>>, vector<32x32xf32>
    %cst = arith.constant dense<0.000000e+00> : vector<8x32xf32>
    %3 = tpu.matmul %1, %2, %cst {dimension_numbers = #tpu.dot_dimension_numbers<[1], [0], [0], [1], [0, 0, 1, 1], [], []>} : vector<8x32xf32>, vector<32x32xf32>, vector<8x32xf32> -> vector<8x32xf32>
    %cst_4 = arith.constant 0.353553385 : f32
    %4 = vector.broadcast %cst_4 : f32 to vector<8x32xf32>
    %5 = arith.mulf %3, %4 : vector<8x32xf32>
    %c0_5 = arith.constant 0 : index
    %c0_6 = arith.constant 0 : index
    %c0_7 = arith.constant 0 : index
    %6 = vector.load %arg2[%c0_5, %c0_6, %c0_7] : memref<1x8x32xf32, #tpu.memory_space<vmem>>, vector<1x8x32xf32>
    %7 = vector.shape_cast %6 : vector<1x8x32xf32> to vector<8x32xf32>
    %c0_8 = arith.constant 0 : index
    %c0_9 = arith.constant 0 : index
    %8 = vector.load %arg5[%c0_8, %c0_9] : memref<32x32xf32, #tpu.memory_space<vmem>>, vector<32x32xf32>
    %cst_10 = arith.constant dense<0.000000e+00> : vector<8x32xf32>
    %9 = tpu.matmul %7, %8, %cst_10 {dimension_numbers = #tpu.dot_dimension_numbers<[1], [0], [0], [1], [0, 0, 1, 1], [], []>} : vector<8x32xf32>, vector<32x32xf32>, vector<8x32xf32> -> vector<8x32xf32>
    %c0_11 = arith.constant 0 : index
    %c0_12 = arith.constant 0 : index
    %c0_13 = arith.constant 0 : index
    %10 = vector.load %arg3[%c0_11, %c0_12, %c0_13] : memref<1x8x32xf32, #tpu.memory_space<vmem>>, vector<1x8x32xf32>
    %11 = vector.shape_cast %10 : vector<1x8x32xf32> to vector<8x32xf32>
    %c0_14 = arith.constant 0 : index
    %c0_15 = arith.constant 0 : index
    %12 = vector.load %arg6[%c0_14, %c0_15] : memref<32x32xf32, #tpu.memory_space<vmem>>, vector<32x32xf32>
    %cst_16 = arith.constant dense<0.000000e+00> : vector<8x32xf32>
    %13 = tpu.matmul %11, %12, %cst_16 {dimension_numbers = #tpu.dot_dimension_numbers<[1], [0], [0], [1], [0, 0, 1, 1], [], []>} : vector<8x32xf32>, vector<32x32xf32>, vector<8x32xf32> -> vector<8x32xf32>
    %14 = vector.extract_strided_slice %5 {offsets = [0, 0], sizes = [8, 8], strides = [1, 1]} : vector<8x32xf32> to vector<8x8xf32>
    %15 = vector.extract_strided_slice %9 {offsets = [0, 0], sizes = [8, 8], strides = [1, 1]} : vector<8x32xf32> to vector<8x8xf32>
    %16 = vector.extract_strided_slice %13 {offsets = [0, 0], sizes = [8, 8], strides = [1, 1]} : vector<8x32xf32> to vector<8x8xf32>
    %cst_17 = arith.constant dense<0.000000e+00> : vector<8x8xf32>
    %17 = tpu.matmul %14, %15, %cst_17 {dimension_numbers = #tpu.dot_dimension_numbers<[1], [1], [0], [0], [0, 0, 1, 0], [], []>} : vector<8x8xf32>, vector<8x8xf32>, vector<8x8xf32> -> vector<8x8xf32>
    %cst_18 = arith.constant dense<0xFF800000> : vector<8xf32>
    %18 = vector.multi_reduction <maximumf>, %17, %cst_18 [1] : vector<8x8xf32> to vector<8xf32>
    %19 = vector.shape_cast %18 : vector<8xf32> to vector<8x1xf32>
    %20 = vector.broadcast %19 : vector<8x1xf32> to vector<8x8xf32>
    %21 = arith.subf %17, %20 : vector<8x8xf32>
    %22 = math.exp %21 : vector<8x8xf32>
    %cst_19 = arith.constant dense<0.000000e+00> : vector<8xf32>
    %23 = vector.multi_reduction <add>, %22, %cst_19 [1] : vector<8x8xf32> to vector<8xf32>
    %24 = vector.shape_cast %23 : vector<8xf32> to vector<8x1xf32>
    %25 = vector.broadcast %24 : vector<8x1xf32> to vector<8x8xf32>
    %26 = arith.divf %22, %25 : vector<8x8xf32>
    %cst_20 = arith.constant dense<0.000000e+00> : vector<8x8xf32>
    %27 = tpu.matmul %26, %16, %cst_20 {dimension_numbers = #tpu.dot_dimension_numbers<[1], [0], [0], [1], [0, 0, 1, 1], [], []>} : vector<8x8xf32>, vector<8x8xf32>, vector<8x8xf32> -> vector<8x8xf32>
    %c0_21 = arith.constant 0 : index
    %c0_22 = arith.constant 0 : index
    %28 = vector.load %arg11[%c0_21, %c0_22] : memref<8x32xf32, #tpu.memory_space<vmem>>, vector<8x8xf32>
    tpu.vector_store %arg11[%c0_21, %c0_22], %27 {strides = array<i32>} : memref<8x32xf32, #tpu.memory_space<vmem>>, vector<8x8xf32>,
    %29 = vector.extract_strided_slice %5 {offsets = [0, 8], sizes = [8, 8], strides = [1, 1]} : vector<8x32xf32> to vector<8x8xf32>
    %30 = vector.extract_strided_slice %9 {offsets = [0, 8], sizes = [8, 8], strides = [1, 1]} : vector<8x32xf32> to vector<8x8xf32>
    %31 = vector.extract_strided_slice %13 {offsets = [0, 8], sizes = [8, 8], strides = [1, 1]} : vector<8x32xf32> to vector<8x8xf32>
    %cst_23 = arith.constant dense<0.000000e+00> : vector<8x8xf32>
    %32 = tpu.matmul %29, %30, %cst_23 {dimension_numbers = #tpu.dot_dimension_numbers<[1], [1], [0], [0], [0, 0, 1, 0], [], []>} : vector<8x8xf32>, vector<8x8xf32>, vector<8x8xf32> -> vector<8x8xf32>
    %cst_24 = arith.constant dense<0xFF800000> : vector<8xf32>
    %33 = vector.multi_reduction <maximumf>, %32, %cst_24 [1] : vector<8x8xf32> to vector<8xf32>
    %34 = vector.shape_cast %33 : vector<8xf32> to vector<8x1xf32>
    %35 = vector.broadcast %34 : vector<8x1xf32> to vector<8x8xf32>
    %36 = arith.subf %32, %35 : vector<8x8xf32>
    %37 = math.exp %36 : vector<8x8xf32>
    %cst_25 = arith.constant dense<0.000000e+00> : vector<8xf32>
    %38 = vector.multi_reduction <add>, %37, %cst_25 [1] : vector<8x8xf32> to vector<8xf32>
    %39 = vector.shape_cast %38 : vector<8xf32> to vector<8x1xf32>
    %40 = vector.broadcast %39 : vector<8x1xf32> to vector<8x8xf32>
    %41 = arith.divf %37, %40 : vector<8x8xf32>
    %cst_26 = arith.constant dense<0.000000e+00> : vector<8x8xf32>
    %42 = tpu.matmul %41, %31, %cst_26 {dimension_numbers = #tpu.dot_dimension_numbers<[1], [0], [0], [1], [0, 0, 1, 1], [], []>} : vector<8x8xf32>, vector<8x8xf32>, vector<8x8xf32> -> vector<8x8xf32>
    %c0_27 = arith.constant 0 : index
    %c8 = arith.constant 8 : index
    %43 = vector.load %arg11[%c0_27, %c8] : memref<8x32xf32, #tpu.memory_space<vmem>>, vector<8x8xf32>
    tpu.vector_store %arg11[%c0_27, %c8], %42 {strides = array<i32>} : memref<8x32xf32, #tpu.memory_space<vmem>>, vector<8x8xf32>,
    %44 = arith.addf %26, %41 : vector<8x8xf32>
    %45 = vector.extract_strided_slice %5 {offsets = [0, 16], sizes = [8, 8], strides = [1, 1]} : vector<8x32xf32> to vector<8x8xf32>
    %46 = vector.extract_strided_slice %9 {offsets = [0, 16], sizes = [8, 8], strides = [1, 1]} : vector<8x32xf32> to vector<8x8xf32>
    %47 = vector.extract_strided_slice %13 {offsets = [0, 16], sizes = [8, 8], strides = [1, 1]} : vector<8x32xf32> to vector<8x8xf32>
    %cst_28 = arith.constant dense<0.000000e+00> : vector<8x8xf32>
    %48 = tpu.matmul %45, %46, %cst_28 {dimension_numbers = #tpu.dot_dimension_numbers<[1], [1], [0], [0], [0, 0, 1, 0], [], []>} : vector<8x8xf32>, vector<8x8xf32>, vector<8x8xf32> -> vector<8x8xf32>
    %cst_29 = arith.constant dense<0xFF800000> : vector<8xf32>
    %49 = vector.multi_reduction <maximumf>, %48, %cst_29 [1] : vector<8x8xf32> to vector<8xf32>
    %50 = vector.shape_cast %49 : vector<8xf32> to vector<8x1xf32>
    %51 = vector.broadcast %50 : vector<8x1xf32> to vector<8x8xf32>
    %52 = arith.subf %48, %51 : vector<8x8xf32>
    %53 = math.exp %52 : vector<8x8xf32>
    %cst_30 = arith.constant dense<0.000000e+00> : vector<8xf32>
    %54 = vector.multi_reduction <add>, %53, %cst_30 [1] : vector<8x8xf32> to vector<8xf32>
    %55 = vector.shape_cast %54 : vector<8xf32> to vector<8x1xf32>
    %56 = vector.broadcast %55 : vector<8x1xf32> to vector<8x8xf32>
    %57 = arith.divf %53, %56 : vector<8x8xf32>
    %cst_31 = arith.constant dense<0.000000e+00> : vector<8x8xf32>
    %58 = tpu.matmul %57, %47, %cst_31 {dimension_numbers = #tpu.dot_dimension_numbers<[1], [0], [0], [1], [0, 0, 1, 1], [], []>} : vector<8x8xf32>, vector<8x8xf32>, vector<8x8xf32> -> vector<8x8xf32>
    %c0_32 = arith.constant 0 : index
    %c16 = arith.constant 16 : index
    %59 = vector.load %arg11[%c0_32, %c16] : memref<8x32xf32, #tpu.memory_space<vmem>>, vector<8x8xf32>
    tpu.vector_store %arg11[%c0_32, %c16], %58 {strides = array<i32>} : memref<8x32xf32, #tpu.memory_space<vmem>>, vector<8x8xf32>,
    %60 = arith.addf %44, %57 : vector<8x8xf32>
    %61 = vector.extract_strided_slice %5 {offsets = [0, 24], sizes = [8, 8], strides = [1, 1]} : vector<8x32xf32> to vector<8x8xf32>
    %62 = vector.extract_strided_slice %9 {offsets = [0, 24], sizes = [8, 8], strides = [1, 1]} : vector<8x32xf32> to vector<8x8xf32>
    %63 = vector.extract_strided_slice %13 {offsets = [0, 24], sizes = [8, 8], strides = [1, 1]} : vector<8x32xf32> to vector<8x8xf32>
    %cst_33 = arith.constant dense<0.000000e+00> : vector<8x8xf32>
    %64 = tpu.matmul %61, %62, %cst_33 {dimension_numbers = #tpu.dot_dimension_numbers<[1], [1], [0], [0], [0, 0, 1, 0], [], []>} : vector<8x8xf32>, vector<8x8xf32>, vector<8x8xf32> -> vector<8x8xf32>
    %cst_34 = arith.constant dense<0xFF800000> : vector<8xf32>
    %65 = vector.multi_reduction <maximumf>, %64, %cst_34 [1] : vector<8x8xf32> to vector<8xf32>
    %66 = vector.shape_cast %65 : vector<8xf32> to vector<8x1xf32>
    %67 = vector.broadcast %66 : vector<8x1xf32> to vector<8x8xf32>
    %68 = arith.subf %64, %67 : vector<8x8xf32>
    %69 = math.exp %68 : vector<8x8xf32>
    %cst_35 = arith.constant dense<0.000000e+00> : vector<8xf32>
    %70 = vector.multi_reduction <add>, %69, %cst_35 [1] : vector<8x8xf32> to vector<8xf32>
    %71 = vector.shape_cast %70 : vector<8xf32> to vector<8x1xf32>
    %72 = vector.broadcast %71 : vector<8x1xf32> to vector<8x8xf32>
    %73 = arith.divf %69, %72 : vector<8x8xf32>
    %cst_36 = arith.constant dense<0.000000e+00> : vector<8x8xf32>
    %74 = tpu.matmul %73, %63, %cst_36 {dimension_numbers = #tpu.dot_dimension_numbers<[1], [0], [0], [1], [0, 0, 1, 1], [], []>} : vector<8x8xf32>, vector<8x8xf32>, vector<8x8xf32> -> vector<8x8xf32>
    %c0_37 = arith.constant 0 : index
    %c24 = arith.constant 24 : index
    %75 = vector.load %arg11[%c0_37, %c24] : memref<8x32xf32, #tpu.memory_space<vmem>>, vector<8x8xf32>
    tpu.vector_store %arg11[%c0_37, %c24], %74 {strides = array<i32>} : memref<8x32xf32, #tpu.memory_space<vmem>>, vector<8x8xf32>,
    %76 = arith.addf %60, %73 : vector<8x8xf32>
    %c0_38 = arith.constant 0 : index
    %c0_39 = arith.constant 0 : index
    %77 = vector.load %arg11[%c0_38, %c0_39] : memref<8x32xf32, #tpu.memory_space<vmem>>, vector<8x32xf32>
    %c0_40 = arith.constant 0 : index
    %c0_41 = arith.constant 0 : index
    %78 = vector.load %arg7[%c0_40, %c0_41] : memref<32x32xf32, #tpu.memory_space<vmem>>, vector<32x32xf32>
    %cst_42 = arith.constant dense<0.000000e+00> : vector<8x32xf32>
    %79 = tpu.matmul %77, %78, %cst_42 {dimension_numbers = #tpu.dot_dimension_numbers<[1], [0], [0], [1], [0, 0, 1, 1], [], []>} : vector<8x32xf32>, vector<32x32xf32>, vector<8x32xf32> -> vector<8x32xf32>
    %c0_43 = arith.constant 0 : index
    %c0_44 = arith.constant 0 : index
    %80 = vector.load %arg8[%c0_43, %c0_44] : memref<1x32xf32, #tpu.memory_space<vmem>>, vector<1x32xf32>
    %81 = vector.broadcast %80 : vector<1x32xf32> to vector<8x32xf32>
    %82 = arith.addf %79, %81 : vector<8x32xf32>
    %c0_45 = arith.constant 0 : index
    %c0_46 = arith.constant 0 : index
    %c0_47 = arith.constant 0 : index
    %83 = vector.load %arg9[%c0_45, %c0_46, %c0_47] : memref<1x8x32xf32, #tpu.memory_space<vmem>>, vector<1x8x32xf32>
    %84 = vector.shape_cast %83 : vector<1x8x32xf32> to vector<8x32xf32>
    %85 = vector.shape_cast %82 : vector<8x32xf32> to vector<1x8x32xf32>
    tpu.vector_store %arg9[%c0_45, %c0_46, %c0_47], %85 {strides = array<i32>} : memref<1x8x32xf32, #tpu.memory_space<vmem>>, vector<1x8x32xf32>,
    %cst_48 = arith.constant 2.500000e-01 : f32
    %86 = vector.broadcast %cst_48 : f32 to vector<8x8xf32>
    %87 = arith.mulf %76, %86 : vector<8x8xf32>
    %c0_49 = arith.constant 0 : index
    %c0_50 = arith.constant 0 : index
    %c0_51 = arith.constant 0 : index
    %88 = vector.load %arg10[%c0_49, %c0_50, %c0_51] : memref<1x8x8xf32, #tpu.memory_space<vmem>>, vector<1x8x8xf32>
    %89 = vector.shape_cast %88 : vector<1x8x8xf32> to vector<8x8xf32>
    %90 = vector.shape_cast %87 : vector<8x8xf32> to vector<1x8x8xf32>
    tpu.vector_store %arg10[%c0_49, %c0_50, %c0_51], %90 {strides = array<i32>} : memref<1x8x8xf32, #tpu.memory_space<vmem>>, vector<1x8x8xf32>,
    return
  }
  func.func @transform_0(%arg0: i32) -> (i32, i32, i32) {
    %c0_i32 = arith.constant 0 : i32
    %c0_i32_0 = arith.constant 0 : i32
    %c0_i32_1 = arith.constant 0 : i32
    return %arg0, %c0_i32, %c0_i32_0 : i32, i32, i32
  }
  func.func @transform_1(%arg0: i32) -> (i32, i32, i32) {
    %c0_i32 = arith.constant 0 : i32
    %c0_i32_0 = arith.constant 0 : i32
    %c0_i32_1 = arith.constant 0 : i32
    return %arg0, %c0_i32, %c0_i32_0 : i32, i32, i32
  }
  func.func @transform_2(%arg0: i32) -> (i32, i32, i32) {
    %c0_i32 = arith.constant 0 : i32
    %c0_i32_0 = arith.constant 0 : i32
    %c0_i32_1 = arith.constant 0 : i32
    return %arg0, %c0_i32, %c0_i32_0 : i32, i32, i32
  }
  func.func @transform_3(%arg0: i32) -> (i32, i32) {
    %c0_i32 = arith.constant 0 : i32
    %c0_i32_0 = arith.constant 0 : i32
    %c0_i32_1 = arith.constant 0 : i32
    return %c0_i32, %c0_i32_0 : i32, i32
  }
  func.func @transform_4(%arg0: i32) -> (i32, i32) {
    %c0_i32 = arith.constant 0 : i32
    %c0_i32_0 = arith.constant 0 : i32
    %c0_i32_1 = arith.constant 0 : i32
    return %c0_i32, %c0_i32_0 : i32, i32
  }
  func.func @transform_5(%arg0: i32) -> (i32, i32) {
    %c0_i32 = arith.constant 0 : i32
    %c0_i32_0 = arith.constant 0 : i32
    %c0_i32_1 = arith.constant 0 : i32
    return %c0_i32, %c0_i32_0 : i32, i32
  }
  func.func @transform_6(%arg0: i32) -> (i32, i32) {
    %c0_i32 = arith.constant 0 : i32
    %c0_i32_0 = arith.constant 0 : i32
    %c0_i32_1 = arith.constant 0 : i32
    return %c0_i32, %c0_i32_0 : i32, i32
  }
  func.func @transform_7(%arg0: i32) -> (i32, i32) {
    %c0_i32 = arith.constant 0 : i32
    %c0_i32_0 = arith.constant 0 : i32
    %c0_i32_1 = arith.constant 0 : i32
    return %c0_i32, %c0_i32_0 : i32, i32
  }
  func.func @transform_8(%arg0: i32) -> (i32, i32, i32) {
    %c0_i32 = arith.constant 0 : i32
    %c0_i32_0 = arith.constant 0 : i32
    %c0_i32_1 = arith.constant 0 : i32
    return %arg0, %c0_i32, %c0_i32_0 : i32, i32, i32
  }
  func.func @transform_9(%arg0: i32) -> (i32, i32, i32) {
    %c0_i32 = arith.constant 0 : i32
    %c0_i32_0 = arith.constant 0 : i32
    %c0_i32_1 = arith.constant 0 : i32
    return %arg0, %c0_i32, %c0_i32_0 : i32, i32, i32
  }
}

</mosaic_0001>

<llo_original>
// kernel: tpu_custom_call.1
$region0: #{tpu_custom_call.1}
  #allocation0 [shape = 'u32[]', space=smem, size = 0x4, offset = 0x4, fixed_abs, tag = 'smem constant byte address 0x4 - core index']
  #allocation1 [shape = 'u32[72,128]{1,0:T(1,128)}', space=vmem, size = 0x9000, scoped, tag = 'internal scratch']
  #allocation2 [shape = 'f32[8,32]{1,0:T(8,128)}', space=vmem, size = 0x1000, scoped, tag = 'scratch operand']
  %s0 = inlined_call_operand.hbm [shape: f32[2,8,32], index: 0, kind: input, shape index: {}]
  %s1 = inlined_call_operand.hbm [shape: f32[2,8,32], index: 1, kind: input, shape index: {}]
  %s2 = inlined_call_operand.hbm [shape: f32[2,8,32], index: 2, kind: input, shape index: {}]
  %s3 = inlined_call_operand.hbm [shape: f32[32,32], index: 3, kind: input, shape index: {}]
  %s4 = inlined_call_operand.hbm [shape: f32[32,32], index: 4, kind: input, shape index: {}]
  %s5 = inlined_call_operand.hbm [shape: f32[32,32], index: 5, kind: input, shape index: {}]
  %s6 = inlined_call_operand.hbm [shape: f32[32,32], index: 6, kind: input, shape index: {}]
  %s7 = inlined_call_operand.vmem [shape: f32[1,32], index: 7, kind: input, shape index: {}]
  %s8 = inlined_call_operand.hbm [shape: f32[2,8,32], index: 8, kind: output, shape index: {0}]
  %s9 = inlined_call_operand.hbm [shape: f32[2,8,8], index: 9, kind: output, shape index: {1}]
  %10 = xla_tuple %s8, %s9
  %s11 = sld [smem:[#allocation0]]
  $region101: #{tpu_custom_call.1} parent=0
    _
  %s13 = ssub.s32 1, %s11
  %s14 = scalar_select 0, %s13, %s11
  $region1: #{tpu_custom_call.1} parent=0
    #allocation3 [shape = 'u8[8192]{0}', space=vmem, size = 0x2000, scoped, tag = 'input window, operand 0']
    #allocation4 [shape = 's32[2]{0}', space=sflag, size = 0x8, scoped, tag = 'scoped memory for tpu_custom_call.1']
    #allocation5 [shape = 's32[2]{0}', space=sflag, size = 0x8, scoped, tag = 'scoped memory for tpu_custom_call.1']
    #allocation6 [shape = 'u8[8192]{0}', space=vmem, size = 0x2000, scoped, tag = 'input window, operand 1']
    #allocation7 [shape = 's32[2]{0}', space=sflag, size = 0x8, scoped, tag = 'scoped memory for tpu_custom_call.1']
    #allocation8 [shape = 'u8[8192]{0}', space=vmem, size = 0x2000, scoped, tag = 'input window, operand 2']
    #allocation9 [shape = 'u8[16384]{0}', space=vmem, size = 0x4000, scoped, tag = 'input window, operand 3, single buffered']
    #allocation10 [shape = 's32[1]{0}', space=sflag, size = 0x4, scoped, tag = 'scoped memory for tpu_custom_call.1']
    #allocation11 [shape = 'u8[16384]{0}', space=vmem, size = 0x4000, scoped, tag = 'input window, operand 4, single buffered']
    #allocation12 [shape = 'u8[16384]{0}', space=vmem, size = 0x4000, scoped, tag = 'input window, operand 5, single buffered']
    #allocation13 [shape = 's32[1]{0}', space=sflag, size = 0x4, scoped, tag = 'scoped memory for tpu_custom_call.1']
    #allocation14 [shape = 'u8[16384]{0}', space=vmem, size = 0x4000, scoped, tag = 'input window, operand 6, single buffered']
    #allocation15 [shape = 'u8[8192]{0}', space=vmem, size = 0x2000, scoped, tag = 'output window, operand 0']
    #allocation16 [shape = 'u8[8192]{0}', space=vmem, size = 0x2000, scoped, tag = 'output window, operand 1']
    #allocation17 [shape = 's32[2]{0}', space=sflag, size = 0x8, scoped, tag = 'scoped memory for tpu_custom_call.1']
    %15 = vsyncpa [#allocation4], 0
    %s16 = scalar_lea.sflag [#allocation4], 1
    %17 = vsyncpa %s16, 0
    %18 = vsyncpa [#allocation7], 0
    %s19 = scalar_lea.sflag [#allocation7], 1
    %20 = vsyncpa %s19, 0
    %21 = vsyncpa [#allocation10], 0
    %22 = vsyncpa [#allocation13], 0
    %23 = vsyncpa [#allocation5], 0
    %s24 = scalar_lea.sflag [#allocation5], 1
    %25 = vsyncpa %s24, 0
    %26 = vsyncpa [#allocation17], 0
    %s27 = scalar_lea.sflag [#allocation17], 1
    %28 = vsyncpa %s27, 0
    loop: start=0, step=1, limit=4
    $region2: #{tpu_custom_call.1} parent=1 // loop_pre_header
      _
    $region3: #{tpu_custom_call.1} parent=1 // loop_header
      %s30 = sphi 0, %s34
      %p31 = scmp.ge.s32.totalorder %s30, 4
      %s40 = sphi 0, %s42
      %s43 = sphi 0, %s40
      %s44 = sphi 0, %s43
      %s60 = sphi 0, %s44
      %s66 = sphi 0, %s68
      %s69 = sphi 0, %s66
      %s70 = sphi 0, %s69
      %s86 = sphi 0, %s70
      %s92 = sphi 0, %s94
      %s95 = sphi 0, %s92
      %s96 = sphi 0, %s95
      %s112 = sphi 0, %s96
      %s116 = sphi 0, %s116
      %s118 = sphi 0, %s116
      %s119 = sphi 0, %s118
      %s133 = sphi 0, %s119
      %s137 = sphi 0, %s137
      %s139 = sphi 0, %s137
      %s140 = sphi 0, %s139
      %s154 = sphi 0, %s140
      %s158 = sphi 0, %s158
      %s160 = sphi 0, %s158
      %s161 = sphi 0, %s160
      %s175 = sphi 0, %s161
      %s179 = sphi 0, %s179
      %s181 = sphi 0, %s179
      %s182 = sphi 0, %s181
      %s196 = sphi 0, %s182
      %s200 = sphi 0, %s200
      %s202 = sphi 0, %s200
      %s203 = sphi 0, %s202
      %s217 = sphi 0, %s203
      %s223 = sphi 0, %s225
      %s226 = sphi 0, %s223
      %s227 = sphi 0, %s226
      %s243 = sphi 0, %s227
      %s249 = sphi 0, %s251
      %s252 = sphi 0, %s249
      %s253 = sphi 0, %s252
      %s269 = sphi 0, %s253
    $region4: #{tpu_custom_call.1} parent=1 // loop_header_branch
      %33 = sbr.rel (%p31) target = $region8
    $region5: #{tpu_custom_call.1} parent=1 // loop_body
      %s35 = ssub.s32 %s30, 1
      %s36 = ssub.s32 %s30, 2
      %s37 = sadd.s32 %s30, 1
      %s38 = ssub.s32 %s30, %s37
      %p39 = scmp.eq.s32.totalorder %s38, 0
      %s41 = sadd.s32 %s40, 1
      %s42 = scalar_select %p39, %s40, %s41
      %p45 = pneg %p39
      %p46 = scmp.eq.s32.totalorder %s30, 1
      %p47 = por %p45, %p46
      %p48 = scmp.ne.s32.totalorder %s40, %s43
      %p49 = scmp.eq.s32.totalorder %s30, 0
      %p50 = por %p48, %p49
      %p51 = scmp.ne.s32.totalorder %s40, %s43
      %p52 = scmp.eq.s32.totalorder %s35, 1
      %p53 = por %p51, %p52
      %p54 = scmp.ne.s32.totalorder %s43, %s44
      %p55 = scmp.eq.s32.totalorder %s35, 0
      %p56 = por %p54, %p55
      %p57 = scmp.ne.s32.totalorder %s43, %s44
      %p58 = scmp.eq.s32.totalorder %s36, 1
      %p59 = por %p57, %p58
      %p61 = scmp.ne.s32.totalorder %s44, %s60
      %p62 = scmp.eq.s32.totalorder %s36, 0
      %p63 = por %p61, %p62
      %s64 = ssub.s32 %s30, %s37
      %p65 = scmp.eq.s32.totalorder %s64, 0
      %s67 = sadd.s32 %s66, 1
      %s68 = scalar_select %p65, %s66, %s67
      %p71 = pneg %p65
      %p72 = scmp.eq.s32.totalorder %s30, 1
      %p73 = por %p71, %p72
      %p74 = scmp.ne.s32.totalorder %s66, %s69
      %p75 = scmp.eq.s32.totalorder %s30, 0
      %p76 = por %p74, %p75
      %p77 = scmp.ne.s32.totalorder %s66, %s69
      %p78 = scmp.eq.s32.totalorder %s35, 1
      %p79 = por %p77, %p78
      %p80 = scmp.ne.s32.totalorder %s69, %s70
      %p81 = scmp.eq.s32.totalorder %s35, 0
      %p82 = por %p80, %p81
      %p83 = scmp.ne.s32.totalorder %s69, %s70
      %p84 = scmp.eq.s32.totalorder %s36, 1
      %p85 = por %p83, %p84
      %p87 = scmp.ne.s32.totalorder %s70, %s86
      %p88 = scmp.eq.s32.totalorder %s36, 0
      %p89 = por %p87, %p88
      %s90 = ssub.s32 %s30, %s37
      %p91 = scmp.eq.s32.totalorder %s90, 0
      %s93 = sadd.s32 %s92, 1
      %s94 = scalar_select %p91, %s92, %s93
      %p97 = pneg %p91
      %p98 = scmp.eq.s32.totalorder %s30, 1
      %p99 = por %p97, %p98
      %p100 = scmp.ne.s32.totalorder %s92, %s95
      %p101 = scmp.eq.s32.totalorder %s30, 0
      %p102 = por %p100, %p101
      %p103 = scmp.ne.s32.totalorder %s92, %s95
      %p104 = scmp.eq.s32.totalorder %s35, 1
      %p105 = por %p103, %p104
      %p106 = scmp.ne.s32.totalorder %s95, %s96
      %p107 = scmp.eq.s32.totalorder %s35, 0
      %p108 = por %p106, %p107
      %p109 = scmp.ne.s32.totalorder %s95, %s96
      %p110 = scmp.eq.s32.totalorder %s36, 1
      %p111 = por %p109, %p110
      %p113 = scmp.ne.s32.totalorder %s96, %s112
      %p114 = scmp.eq.s32.totalorder %s36, 0
      %p115 = por %p113, %p114
      %s117 = sadd.s32 %s116, 1
      %p120 = scmp.eq.s32.totalorder %s30, 1
      %p121 = scmp.ne.s32.totalorder %s116, %s118
      %p122 = scmp.eq.s32.totalorder %s30, 0
      %p123 = por %p121, %p122
      %p124 = scmp.ne.s32.totalorder %s116, %s118
      %p125 = scmp.eq.s32.totalorder %s35, 1
      %p126 = por %p124, %p125
      %p127 = scmp.ne.s32.totalorder %s118, %s119
      %p128 = scmp.eq.s32.totalorder %s35, 0
      %p129 = por %p127, %p128
      %p130 = scmp.ne.s32.totalorder %s118, %s119
      %p131 = scmp.eq.s32.totalorder %s36, 1
      %p132 = por %p130, %p131
      %p134 = scmp.ne.s32.totalorder %s119, %s133
      %p135 = scmp.eq.s32.totalorder %s36, 0
      %p136 = por %p134, %p135
      %s138 = sadd.s32 %s137, 1
      %p141 = scmp.eq.s32.totalorder %s30, 1
      %p142 = scmp.ne.s32.totalorder %s137, %s139
      %p143 = scmp.eq.s32.totalorder %s30, 0
      %p144 = por %p142, %p143
      %p145 = scmp.ne.s32.totalorder %s137, %s139
      %p146 = scmp.eq.s32.totalorder %s35, 1
      %p147 = por %p145, %p146
      %p148 = scmp.ne.s32.totalorder %s139, %s140
      %p149 = scmp.eq.s32.totalorder %s35, 0
      %p150 = por %p148, %p149
      %p151 = scmp.ne.s32.totalorder %s139, %s140
      %p152 = scmp.eq.s32.totalorder %s36, 1
      %p153 = por %p151, %p152
      %p155 = scmp.ne.s32.totalorder %s140, %s154
      %p156 = scmp.eq.s32.totalorder %s36, 0
      %p157 = por %p155, %p156
      %s159 = sadd.s32 %s158, 1
      %p162 = scmp.eq.s32.totalorder %s30, 1
      %p163 = scmp.ne.s32.totalorder %s158, %s160
      %p164 = scmp.eq.s32.totalorder %s30, 0
      %p165 = por %p163, %p164
      %p166 = scmp.ne.s32.totalorder %s158, %s160
      %p167 = scmp.eq.s32.totalorder %s35, 1
      %p168 = por %p166, %p167
      %p169 = scmp.ne.s32.totalorder %s160, %s161
      %p170 = scmp.eq.s32.totalorder %s35, 0
      %p171 = por %p169, %p170
      %p172 = scmp.ne.s32.totalorder %s160, %s161
      %p173 = scmp.eq.s32.totalorder %s36, 1
      %p174 = por %p172, %p173
      %p176 = scmp.ne.s32.totalorder %s161, %s175
      %p177 = scmp.eq.s32.totalorder %s36, 0
      %p178 = por %p176, %p177
      %s180 = sadd.s32 %s179, 1
      %p183 = scmp.eq.s32.totalorder %s30, 1
      %p184 = scmp.ne.s32.totalorder %s179, %s181
      %p185 = scmp.eq.s32.totalorder %s30, 0
      %p186 = por %p184, %p185
      %p187 = scmp.ne.s32.totalorder %s179, %s181
      %p188 = scmp.eq.s32.totalorder %s35, 1
      %p189 = por %p187, %p188
      %p190 = scmp.ne.s32.totalorder %s181, %s182
      %p191 = scmp.eq.s32.totalorder %s35, 0
      %p192 = por %p190, %p191
      %p193 = scmp.ne.s32.totalorder %s181, %s182
      %p194 = scmp.eq.s32.totalorder %s36, 1
      %p195 = por %p193, %p194
      %p197 = scmp.ne.s32.totalorder %s182, %s196
      %p198 = scmp.eq.s32.totalorder %s36, 0
      %p199 = por %p197, %p198
      %s201 = sadd.s32 %s200, 1
      %p204 = scmp.eq.s32.totalorder %s30, 1
      %p205 = scmp.ne.s32.totalorder %s200, %s202
      %p206 = scmp.eq.s32.totalorder %s30, 0
      %p207 = por %p205, %p206
      %p208 = scmp.ne.s32.totalorder %s200, %s202
      %p209 = scmp.eq.s32.totalorder %s35, 1
      %p210 = por %p208, %p209
      %p211 = scmp.ne.s32.totalorder %s202, %s203
      %p212 = scmp.eq.s32.totalorder %s35, 0
      %p213 = por %p211, %p212
      %p214 = scmp.ne.s32.totalorder %s202, %s203
      %p215 = scmp.eq.s32.totalorder %s36, 1
      %p216 = por %p214, %p215
      %p218 = scmp.ne.s32.totalorder %s203, %s217
      %p219 = scmp.eq.s32.totalorder %s36, 0
      %p220 = por %p218, %p219
      %s221 = ssub.s32 %s30, %s37
      %p222 = scmp.eq.s32.totalorder %s221, 0
      %s224 = sadd.s32 %s223, 1
      %s225 = scalar_select %p222, %s223, %s224
      %p228 = pneg %p222
      %p229 = scmp.eq.s32.totalorder %s30, 1
      %p230 = por %p228, %p229
      %p231 = scmp.ne.s32.totalorder %s223, %s226
      %p232 = scmp.eq.s32.totalorder %s30, 0
      %p233 = por %p231, %p232
      %p234 = scmp.ne.s32.totalorder %s223, %s226
      %p235 = scmp.eq.s32.totalorder %s35, 1
      %p236 = por %p234, %p235
      %p237 = scmp.ne.s32.totalorder %s226, %s227
      %p238 = scmp.eq.s32.totalorder %s35, 0
      %p239 = por %p237, %p238
      %p240 = scmp.ne.s32.totalorder %s226, %s227
      %p241 = scmp.eq.s32.totalorder %s36, 1
      %p242 = por %p240, %p241
      %p244 = scmp.ne.s32.totalorder %s227, %s243
      %p245 = scmp.eq.s32.totalorder %s36, 0
      %p246 = por %p244, %p245
      %s247 = ssub.s32 %s30, %s37
      %p248 = scmp.eq.s32.totalorder %s247, 0
      %s250 = sadd.s32 %s249, 1
      %s251 = scalar_select %p248, %s249, %s250
      %p254 = pneg %p248
      %p255 = scmp.eq.s32.totalorder %s30, 1
      %p256 = por %p254, %p255
      %p257 = scmp.ne.s32.totalorder %s249, %s252
      %p258 = scmp.eq.s32.totalorder %s30, 0
      %p259 = por %p257, %p258
      %p260 = scmp.ne.s32.totalorder %s249, %s252
      %p261 = scmp.eq.s32.totalorder %s35, 1
      %p262 = por %p260, %p261
      %p263 = scmp.ne.s32.totalorder %s252, %s253
      %p264 = scmp.eq.s32.totalorder %s35, 0
      %p265 = por %p263, %p264
      %p266 = scmp.ne.s32.totalorder %s252, %s253
      %p267 = scmp.eq.s32.totalorder %s36, 1
      %p268 = por %p266, %p267
      %p270 = scmp.ne.s32.totalorder %s253, %s269
      %p271 = scmp.eq.s32.totalorder %s36, 0
      %p272 = por %p270, %p271
      %p273 = scmp.le.s32.totalorder 1, %s30
      %p274 = scmp.lt.s32.totalorder %s30, 3
      %p275 = pnand %p273, %p274
      %p276 = pneg %p275
      // Predicated region
      $region9: #{tpu_custom_call.1} parent=5 // pred_check
        _
      $region10: #{tpu_custom_call.1} parent=5 // pred_check_branch
        %278 = sbr.rel (%p275) target = $region12
      $region11: #{tpu_custom_call.1} parent=5 // pred_region
        %s279 = ssub.s32 %s30, 1
        // Predicated region
        $region13: #{tpu_custom_call.1} parent=11 // pred_check
          %p280 = pneg %p129
        $region14: #{tpu_custom_call.1} parent=11 // pred_check_branch
          %282 = sbr.rel (%p280) target = $region16
        $region15: #{tpu_custom_call.1} parent=11 // pred_region
          %284 = vsyncadd [#allocation10], 0
          %s285 = sshll.u32 %s3, 4
          %s286 = int_to_ptr.hbm [resolvable:$true] %s285
          %s287 = sshll.u32 [#allocation9], 4
          %s288 = int_to_ptr.vmem [resolvable:$true] %s287
          %293 = dma.hbm_to_vmem [thread:$0]  %s286, 512, %s288, [#allocation10], 128, 128, 8
        $region16: #{tpu_custom_call.1} parent=11 // pred_fallthru
          _
        // Predicated region
        $region17: #{tpu_custom_call.1} parent=11 // pred_check
          %p294 = pneg %p150
        $region18: #{tpu_custom_call.1} parent=11 // pred_check_branch
          %296 = sbr.rel (%p294) target = $region20
        $region19: #{tpu_custom_call.1} parent=11 // pred_region
          %298 = vsyncadd [#allocation10], 0
          %s299 = sshll.u32 %s4, 4
          %s300 = int_to_ptr.hbm [resolvable:$true] %s299
          %s301 = sshll.u32 [#allocation11], 4
          %s302 = int_to_ptr.vmem [resolvable:$true] %s301
          %307 = dma.hbm_to_vmem [thread:$0]  %s300, 512, %s302, [#allocation10], 128, 128, 8
        $region20: #{tpu_custom_call.1} parent=11 // pred_fallthru
          _
        // Predicated region
        $region21: #{tpu_custom_call.1} parent=11 // pred_check
          %p308 = pneg %p171
        $region22: #{tpu_custom_call.1} parent=11 // pred_check_branch
          %310 = sbr.rel (%p308) target = $region24
        $region23: #{tpu_custom_call.1} parent=11 // pred_region
          %312 = vsyncadd [#allocation13], 0
          %s313 = sshll.u32 %s5, 4
          %s314 = int_to_ptr.hbm [resolvable:$true] %s313
          %s315 = sshll.u32 [#allocation12], 4
          %s316 = int_to_ptr.vmem [resolvable:$true] %s315
          %321 = dma.hbm_to_vmem [thread:$0]  %s314, 512, %s316, [#allocation13], 128, 128, 8
        $region24: #{tpu_custom_call.1} parent=11 // pred_fallthru
          _
        // Predicated region
        $region25: #{tpu_custom_call.1} parent=11 // pred_check
          %p322 = pneg %p192
        $region26: #{tpu_custom_call.1} parent=11 // pred_check_branch
          %324 = sbr.rel (%p322) target = $region28
        $region27: #{tpu_custom_call.1} parent=11 // pred_region
          %326 = vsyncadd [#allocation13], 0
          %s327 = sshll.u32 %s6, 4
          %s328 = int_to_ptr.hbm [resolvable:$true] %s327
          %s329 = sshll.u32 [#allocation14], 4
          %s330 = int_to_ptr.vmem [resolvable:$true] %s329
          %335 = dma.hbm_to_vmem [thread:$0]  %s328, 512, %s330, [#allocation13], 128, 128, 8
        $region28: #{tpu_custom_call.1} parent=11 // pred_fallthru
          _
        // Predicated region
        $region29: #{tpu_custom_call.1} parent=11 // pred_check
          %p336 = pneg %p213
        $region30: #{tpu_custom_call.1} parent=11 // pred_check_branch
          %338 = sbr.rel (%p336) target = $region32
        $region31: #{tpu_custom_call.1} parent=11 // pred_region
          _
        $region32: #{tpu_custom_call.1} parent=11 // pred_fallthru
          _
      $region12: #{tpu_custom_call.1} parent=5 // pred_fallthru
        _
      %p339 = scmp.lt.s32.totalorder %s30, 2
      // Predicated region
      $region33: #{tpu_custom_call.1} parent=5 // pred_check
        %p340 = pneg %p339
      $region34: #{tpu_custom_call.1} parent=5 // pred_check_branch
        %342 = sbr.rel (%p340) target = $region36
      $region35: #{tpu_custom_call.1} parent=5 // pred_region
        // Predicated region
        $region37: #{tpu_custom_call.1} parent=35 // pred_check
          %p343 = pneg %p50
        $region38: #{tpu_custom_call.1} parent=35 // pred_check_branch
          %345 = sbr.rel (%p343) target = $region40
        $region39: #{tpu_custom_call.1} parent=35 // pred_region
          %s346 = sand.u32 %s40, 1
          %s347 = scalar_lea.sflag [#allocation4], %s346
          %s348 = sand.u32 %s40, 1
          %s349 = smul.addr %s348, 8
          %s350 = scalar_lea.vmem [#allocation3], %s349
          %352 = vsyncadd %s347, 0
          %s353 = smul.addr %s30, 8
          %s354 = scalar_lea.hbm %s0, %s353
          %s356 = sshll.u32 %s354, 4
          %s357 = int_to_ptr.hbm [resolvable:$true] %s356
          %s358 = sshll.u32 %s350, 4
          %s359 = int_to_ptr.vmem [resolvable:$true] %s358
          %361 = dma.hbm_to_vmem [thread:$0]  %s357, 128, %s359, %s347
        $region40: #{tpu_custom_call.1} parent=35 // pred_fallthru
          _
        // Predicated region
        $region41: #{tpu_custom_call.1} parent=35 // pred_check
          %p362 = pneg %p76
        $region42: #{tpu_custom_call.1} parent=35 // pred_check_branch
          %364 = sbr.rel (%p362) target = $region44
        $region43: #{tpu_custom_call.1} parent=35 // pred_region
          %s365 = sand.u32 %s30, 1
          %s366 = scalar_lea.sflag [#allocation7], %s365
          %s367 = sand.u32 %s66, 1
          %s368 = smul.addr %s367, 8
          %s369 = scalar_lea.vmem [#allocation6], %s368
          %371 = vsyncadd %s366, 0
          %s372 = smul.addr %s30, 8
          %s373 = scalar_lea.hbm %s1, %s372
          %s375 = sshll.u32 %s373, 4
          %s376 = int_to_ptr.hbm [resolvable:$true] %s375
          %s377 = sshll.u32 %s369, 4
          %s378 = int_to_ptr.vmem [resolvable:$true] %s377
          %380 = dma.hbm_to_vmem [thread:$0]  %s376, 128, %s378, %s366
        $region44: #{tpu_custom_call.1} parent=35 // pred_fallthru
          _
        // Predicated region
        $region45: #{tpu_custom_call.1} parent=35 // pred_check
          %p381 = pneg %p102
        $region46: #{tpu_custom_call.1} parent=35 // pred_check_branch
          %383 = sbr.rel (%p381) target = $region48
        $region47: #{tpu_custom_call.1} parent=35 // pred_region
          %s384 = sand.u32 %s30, 1
          %s385 = scalar_lea.sflag [#allocation7], %s384
          %s386 = sand.u32 %s92, 1
          %s387 = smul.addr %s386, 8
          %s388 = scalar_lea.vmem [#allocation8], %s387
          %390 = vsyncadd %s385, 0
          %s391 = smul.addr %s30, 8
          %s392 = scalar_lea.hbm %s2, %s391
          %s394 = sshll.u32 %s392, 4
          %s395 = int_to_ptr.hbm [resolvable:$true] %s394
          %s396 = sshll.u32 %s388, 4
          %s397 = int_to_ptr.vmem [resolvable:$true] %s396
          %399 = dma.hbm_to_vmem [thread:$0]  %s395, 128, %s397, %s385
        $region48: #{tpu_custom_call.1} parent=35 // pred_fallthru
          _
      $region36: #{tpu_custom_call.1} parent=5 // pred_fallthru
        _
      %p400 = scmp.le.s32.totalorder 1, %s30
      %p401 = scmp.lt.s32.totalorder %s30, 3
      %p402 = pnand %p400, %p401
      %p403 = pneg %p402
      // Predicated region
      $region49: #{tpu_custom_call.1} parent=5 // pred_check
        _
      $region50: #{tpu_custom_call.1} parent=5 // pred_check_branch
        %405 = sbr.rel (%p402) target = $region52
      $region51: #{tpu_custom_call.1} parent=5 // pred_region
        %s406 = ssub.s32 %s30, 1
        %s407 = sand.u32 %s43, 1
        %s408 = scalar_lea.sflag [#allocation4], %s407
        %s409 = sand.u32 %s43, 1
        %s410 = smul.addr %s409, 8
        %s411 = scalar_lea.vmem [#allocation3], %s410
        // Predicated region
        $region53: #{tpu_custom_call.1} parent=51 // pred_check
          %p412 = pneg %p56
        $region54: #{tpu_custom_call.1} parent=51 // pred_check_branch
          %414 = sbr.rel (%p412) target = $region56
        $region55: #{tpu_custom_call.1} parent=51 // pred_region
          %416 = dma.done %s408, 128
        $region56: #{tpu_custom_call.1} parent=51 // pred_fallthru
          _
        %s417 = sand.u32 %s35, 1
        %s418 = scalar_lea.sflag [#allocation7], %s417
        %s419 = sand.u32 %s69, 1
        %s420 = smul.addr %s419, 8
        %s421 = scalar_lea.vmem [#allocation6], %s420
        // Predicated region
        $region57: #{tpu_custom_call.1} parent=51 // pred_check
          %p422 = pneg %p82
        $region58: #{tpu_custom_call.1} parent=51 // pred_check_branch
          %424 = sbr.rel (%p422) target = $region60
        $region59: #{tpu_custom_call.1} parent=51 // pred_region
          %426 = dma.done %s418, 128
        $region60: #{tpu_custom_call.1} parent=51 // pred_fallthru
          _
        %s427 = sand.u32 %s35, 1
        %s428 = scalar_lea.sflag [#allocation7], %s427
        %s429 = sand.u32 %s95, 1
        %s430 = smul.addr %s429, 8
        %s431 = scalar_lea.vmem [#allocation8], %s430
        // Predicated region
        $region61: #{tpu_custom_call.1} parent=51 // pred_check
          %p432 = pneg %p108
        $region62: #{tpu_custom_call.1} parent=51 // pred_check_branch
          %434 = sbr.rel (%p432) target = $region64
        $region63: #{tpu_custom_call.1} parent=51 // pred_region
          %436 = dma.done %s428, 128
        $region64: #{tpu_custom_call.1} parent=51 // pred_fallthru
          _
        // Predicated region
        $region65: #{tpu_custom_call.1} parent=51 // pred_check
          %p437 = pneg %p129
        $region66: #{tpu_custom_call.1} parent=51 // pred_check_branch
          %439 = sbr.rel (%p437) target = $region68
        $region67: #{tpu_custom_call.1} parent=51 // pred_region
          %441 = dma.done [#allocation10], 512
        $region68: #{tpu_custom_call.1} parent=51 // pred_fallthru
          _
        // Predicated region
        $region69: #{tpu_custom_call.1} parent=51 // pred_check
          %p442 = pneg %p150
        $region70: #{tpu_custom_call.1} parent=51 // pred_check_branch
          %444 = sbr.rel (%p442) target = $region72
        $region71: #{tpu_custom_call.1} parent=51 // pred_region
          %446 = dma.done [#allocation10], 512
        $region72: #{tpu_custom_call.1} parent=51 // pred_fallthru
          _
        // Predicated region
        $region73: #{tpu_custom_call.1} parent=51 // pred_check
          %p447 = pneg %p171
        $region74: #{tpu_custom_call.1} parent=51 // pred_check_branch
          %449 = sbr.rel (%p447) target = $region76
        $region75: #{tpu_custom_call.1} parent=51 // pred_region
          %451 = dma.done [#allocation13], 512
        $region76: #{tpu_custom_call.1} parent=51 // pred_fallthru
          _
        // Predicated region
        $region77: #{tpu_custom_call.1} parent=51 // pred_check
          %p452 = pneg %p192
        $region78: #{tpu_custom_call.1} parent=51 // pred_check_branch
          %454 = sbr.rel (%p452) target = $region80
        $region79: #{tpu_custom_call.1} parent=51 // pred_region
          %456 = dma.done [#allocation13], 512
        $region80: #{tpu_custom_call.1} parent=51 // pred_fallthru
          _
        %s457 = sand.u32 %s43, 1
        %s458 = scalar_lea.sflag [#allocation4], %s457
        %s459 = sand.u32 %s43, 1
        %s460 = smul.addr %s459, 8
        %s461 = scalar_lea.vmem [#allocation3], %s460
        %p462 = pneg %p56
        %p463 = pneg %p53
        %s464 = sand.u32 %s35, 1
        %s465 = scalar_lea.sflag [#allocation7], %s464
        %s466 = sand.u32 %s69, 1
        %s467 = smul.addr %s466, 8
        %s468 = scalar_lea.vmem [#allocation6], %s467
        %p469 = pneg %p82
        %p470 = pneg %p79
        %s471 = sand.u32 %s35, 1
        %s472 = scalar_lea.sflag [#allocation7], %s471
        %s473 = sand.u32 %s95, 1
        %s474 = smul.addr %s473, 8
        %s475 = scalar_lea.vmem [#allocation8], %s474
        %p476 = pneg %p108
        %p477 = pneg %p105
        %p478 = pneg %p129
        %p479 = pneg %p126
        %p480 = pneg %p150
        %p481 = pneg %p147
        %p482 = pneg %p171
        %p483 = pneg %p168
        %p484 = pneg %p192
        %p485 = pneg %p189
        %p486 = pneg %p213
        %p487 = pneg %p210
        %p488 = pneg %p239
        %p489 = pneg %p236
        %s490 = sand.u32 %s226, 1
        %s491 = scalar_lea.sflag [#allocation5], %s490
        %s492 = sand.u32 %s226, 1
        %s493 = smul.addr %s492, 8
        %s494 = scalar_lea.vmem [#allocation15], %s493
        %p495 = pneg %p265
        %p496 = pneg %p262
        %s497 = sand.u32 %s252, 1
        %s498 = scalar_lea.sflag [#allocation17], %s497
        %s499 = sand.u32 %s252, 1
        %s500 = smul.addr %s499, 8
        %s501 = scalar_lea.vmem [#allocation16], %s500
        %v502 = vld [vmem:[%s411] sm:$0xff]
        %v503 = vld [vmem:[#allocation9] sm:$0xff]
        %v504 = vld [vmem:[#allocation9 + $0x8] sm:$0xff]
        %v505 = vld [vmem:[#allocation9 + $0x10] sm:$0xff]
        %v506 = vld [vmem:[#allocation9 + $0x18] sm:$0xff]
        %vm507 = vcmask 261120
        %v509 = vsel %vm507, %v502, 0
        %511 = vmatpush.msra.mxu0 0.0
        %512 = vmatpush.msra.mxu0 0.0
        %513 = vmatpush.msra.mxu0 0.0
        %514 = vmatpush.msra.mxu0 0.0
        %515 = vmatpush.msra.mxu0 0.0
        %516 = vmatpush.msra.mxu0 0.0
        %517 = vmatpush.msra.mxu0 0.0
        %518 = vmatpush.msra.mxu0 0.0
        %519 = vmatpush.msra.mxu0 0.0
        %520 = vmatpush.msra.mxu0 0.0
        %521 = vmatpush.msra.mxu0 0.0
        %522 = vmatpush.msra.mxu0 0.0
        %523 = vmatpush.msra.mxu0 %v506
        %524 = vmatpush.msra.mxu0 %v505
        %525 = vmatpush.msra.mxu0 %v504
        %526 = vmatpush.msra.mxu0 %v503
        %527 = vmatmul.f32.gmra.mxu0 %v509
        %v528 = vpop.f32.mrf.mxu0
        %v529 = vadd.f32 0.0, %v528
        %530 = vdwg.mxu0
        %v531 = vmul.f32 %v529, 0.35355338
        %v532 = vld [vmem:[%s421] sm:$0xff]
        %v533 = vld [vmem:[#allocation11] sm:$0xff]
        %v534 = vld [vmem:[#allocation11 + $0x8] sm:$0xff]
        %v535 = vld [vmem:[#allocation11 + $0x10] sm:$0xff]
        %v536 = vld [vmem:[#allocation11 + $0x18] sm:$0xff]
        %v538 = vsel %vm507, %v532, 0
        %540 = vmatpush.msra.mxu0 0.0
        %541 = vmatpush.msra.mxu0 0.0
        %542 = vmatpush.msra.mxu0 0.0
        %543 = vmatpush.msra.mxu0 0.0
        %544 = vmatpush.msra.mxu0 0.0
        %545 = vmatpush.msra.mxu0 0.0
        %546 = vmatpush.msra.mxu0 0.0
        %547 = vmatpush.msra.mxu0 0.0
        %548 = vmatpush.msra.mxu0 0.0
        %549 = vmatpush.msra.mxu0 0.0
        %550 = vmatpush.msra.mxu0 0.0
        %551 = vmatpush.msra.mxu0 0.0
        %552 = vmatpush.msra.mxu0 %v536
        %553 = vmatpush.msra.mxu0 %v535
        %554 = vmatpush.msra.mxu0 %v534
        %555 = vmatpush.msra.mxu0 %v533
        %556 = vmatmul.f32.gmra.mxu0 %v538
        %v557 = vpop.f32.mrf.mxu0
        %v558 = vadd.f32 0.0, %v557
        %559 = vdwg.mxu0
        %v560 = vld [vmem:[%s431] sm:$0xff]
        %v561 = vld [vmem:[#allocation12] sm:$0xff]
        %v562 = vld [vmem:[#allocation12 + $0x8] sm:$0xff]
        %v563 = vld [vmem:[#allocation12 + $0x10] sm:$0xff]
        %v564 = vld [vmem:[#allocation12 + $0x18] sm:$0xff]
        %v566 = vsel %vm507, %v560, 0
        %568 = vmatpush.msra.mxu0 0.0
        %569 = vmatpush.msra.mxu0 0.0
        %570 = vmatpush.msra.mxu0 0.0
        %571 = vmatpush.msra.mxu0 0.0
        %572 = vmatpush.msra.mxu0 0.0
        %573 = vmatpush.msra.mxu0 0.0
        %574 = vmatpush.msra.mxu0 0.0
        %575 = vmatpush.msra.mxu0 0.0
        %576 = vmatpush.msra.mxu0 0.0
        %577 = vmatpush.msra.mxu0 0.0
        %578 = vmatpush.msra.mxu0 0.0
        %579 = vmatpush.msra.mxu0 0.0
        %580 = vmatpush.msra.mxu0 %v564
        %581 = vmatpush.msra.mxu0 %v563
        %582 = vmatpush.msra.mxu0 %v562
        %583 = vmatpush.msra.mxu0 %v561
        %584 = vmatmul.f32.gmra.mxu0 %v566
        %v585 = vpop.f32.mrf.mxu0
        %v586 = vadd.f32 0.0, %v585
        %587 = vdwg.mxu0
        %vm588 = vcmask 64512
        %v590 = vsel %vm588, %v531, 0
        %v593 = vsel %vm588, %v558, 0
        %595 = vmatpush.xpose.msra.mxu0 0.0
        %596 = vmatpush.xpose.msra.mxu0 0.0
        %597 = vmatpush.xpose.msra.mxu0 0.0
        %598 = vmatpush.xpose.msra.mxu0 0.0
        %599 = vmatpush.xpose.msra.mxu0 0.0
        %600 = vmatpush.xpose.msra.mxu0 0.0
        %601 = vmatpush.xpose.msra.mxu0 0.0
        %602 = vmatpush.xpose.msra.mxu0 0.0
        %603 = vmatpush.xpose.msra.mxu0 0.0
        %604 = vmatpush.xpose.msra.mxu0 0.0
        %605 = vmatpush.xpose.msra.mxu0 0.0
        %606 = vmatpush.xpose.msra.mxu0 0.0
        %607 = vmatpush.xpose.msra.mxu0 0.0
        %608 = vmatpush.xpose.msra.mxu0 0.0
        %609 = vmatpush.xpose.msra.mxu0 0.0
        %610 = vmatpush.xpose.msra.mxu0 %v593
        %611 = vmatmul.f32.gmra.mxu0 %v590
        %v612 = vpop.f32.mrf.mxu0
        %v613 = vadd.f32 0.0, %v612
        %614 = vdwg.mxu0
        %v615 = vsel %vm588, %v613, -inf
        %616 = vmax.xlane.f32.xlu0 %v615
        %v617 = vpop.xlane.xlu0 %616
        %v618 = vsub.f32 %v613, %v617
        %v619 = vmul.f32 %v618, 1.442695
        %v620 = vpow.pop %v619
        %v621 = vsel %vm588, %v620, 0.0
        %622 = vadd.xlane.f32.xlu0 %v621
        %v623 = vpop.xlane.xlu0 %622
        %v624 = vrcp.pop %v623
        %v625 = vmul.f32 %v623, %v624
        %v626 = vsub.f32 1.0, %v625
        %v627 = vmul.f32 %v624, %v626
        %v628 = vadd.f32 %v624, %v627
        %vm629 = vweird.f32 %v623
        %vm630 = vweird.f32 %v624
        %vm631 = vmor %vm629, %vm630
        %v632 = vsel %vm631, %v624, %v628
        %v633 = vand.u32 2147483647, %v623
        %vm634 = vcmp.eq.f32.partialorder %v633, 8.507059e+37
        %v635 = vand.u32 %v623, 2147483648
        %v636 = vor.u32 1.1754944e-38, %v635
        %v637 = vsel %vm634, %v636, %v632
        %v638 = vmul.f32 %v620, %v637
        %v640 = vsel %vm588, %v638, 0
        %642 = vmatpush.msra.mxu0 0.0
        %643 = vmatpush.msra.mxu0 0.0
        %644 = vmatpush.msra.mxu0 0.0
        %645 = vmatpush.msra.mxu0 0.0
        %646 = vmatpush.msra.mxu0 0.0
        %647 = vmatpush.msra.mxu0 0.0
        %648 = vmatpush.msra.mxu0 0.0
        %649 = vmatpush.msra.mxu0 0.0
        %650 = vmatpush.msra.mxu0 0.0
        %651 = vmatpush.msra.mxu0 0.0
        %652 = vmatpush.msra.mxu0 0.0
        %653 = vmatpush.msra.mxu0 0.0
        %654 = vmatpush.msra.mxu0 0.0
        %655 = vmatpush.msra.mxu0 0.0
        %656 = vmatpush.msra.mxu0 0.0
        %657 = vmatpush.msra.mxu0 %v586
        %658 = vmatmul.f32.gmra.mxu0 %v640
        %v659 = vpop.f32.mrf.mxu0
        %v660 = vadd.f32 0.0, %v659
        %661 = vdwg.mxu0
        %662 = vst.msk [vmem:[#allocation2] sm:$0xff] %vm588, %v660
        %663 = vrot.lane.b32.xlu0 %v531, 120
        %v664 = vpop.permute.xlu0 %663
        %665 = vrot.lane.b32.xlu0 %v558, 120
        %v666 = vpop.permute.xlu0 %665
        %v667 = vsel %vm588, %v664, 0
        %v669 = vsel %vm588, %v666, 0
        %671 = vmatpush.xpose.msra.mxu0 0.0
        %672 = vmatpush.xpose.msra.mxu0 0.0
        %673 = vmatpush.xpose.msra.mxu0 0.0
        %674 = vmatpush.xpose.msra.mxu0 0.0
        %675 = vmatpush.xpose.msra.mxu0 0.0
        %676 = vmatpush.xpose.msra.mxu0 0.0
        %677 = vmatpush.xpose.msra.mxu0 0.0
        %678 = vmatpush.xpose.msra.mxu0 0.0
        %679 = vmatpush.xpose.msra.mxu0 0.0
        %680 = vmatpush.xpose.msra.mxu0 0.0
        %681 = vmatpush.xpose.msra.mxu0 0.0
        %682 = vmatpush.xpose.msra.mxu0 0.0
        %683 = vmatpush.xpose.msra.mxu0 0.0
        %684 = vmatpush.xpose.msra.mxu0 0.0
        %685 = vmatpush.xpose.msra.mxu0 0.0
        %686 = vmatpush.xpose.msra.mxu0 %v669
        %687 = vmatmul.f32.gmra.mxu0 %v667
        %v688 = vpop.f32.mrf.mxu0
        %v689 = vadd.f32 0.0, %v688
        %690 = vdwg.mxu0
        %v691 = vsel %vm588, %v689, -inf
        %692 = vmax.xlane.f32.xlu0 %v691
        %v693 = vpop.xlane.xlu0 %692
        %v694 = vsub.f32 %v689, %v693
        %v695 = vmul.f32 %v694, 1.442695
        %v696 = vpow.pop %v695
        %v697 = vsel %vm588, %v696, 0.0
        %698 = vadd.xlane.f32.xlu0 %v697
        %v699 = vpop.xlane.xlu0 %698
        %v700 = vrcp.pop %v699
        %v701 = vmul.f32 %v699, %v700
        %v702 = vsub.f32 1.0, %v701
        %v703 = vmul.f32 %v700, %v702
        %v704 = vadd.f32 %v700, %v703
        %vm705 = vweird.f32 %v699
        %vm706 = vweird.f32 %v700
        %vm707 = vmor %vm705, %vm706
        %v708 = vsel %vm707, %v700, %v704
        %v709 = vand.u32 2147483647, %v699
        %vm710 = vcmp.eq.f32.partialorder %v709, 8.507059e+37
        %v711 = vand.u32 %v699, 2147483648
        %v712 = vor.u32 1.1754944e-38, %v711
        %v713 = vsel %vm710, %v712, %v708
        %v714 = vmul.f32 %v696, %v713
        %716 = vrot.lane.b32.xlu0 %v586, 120
        %v717 = vpop.permute.xlu0 %716
        %v720 = vsel %vm588, %v714, 0
        %722 = vmatpush.msra.mxu0 0.0
        %723 = vmatpush.msra.mxu0 0.0
        %724 = vmatpush.msra.mxu0 0.0
        %725 = vmatpush.msra.mxu0 0.0
        %726 = vmatpush.msra.mxu0 0.0
        %727 = vmatpush.msra.mxu0 0.0
        %728 = vmatpush.msra.mxu0 0.0
        %729 = vmatpush.msra.mxu0 0.0
        %730 = vmatpush.msra.mxu0 0.0
        %731 = vmatpush.msra.mxu0 0.0
        %732 = vmatpush.msra.mxu0 0.0
        %733 = vmatpush.msra.mxu0 0.0
        %734 = vmatpush.msra.mxu0 0.0
        %735 = vmatpush.msra.mxu0 0.0
        %736 = vmatpush.msra.mxu0 0.0
        %737 = vmatpush.msra.mxu0 %v717
        %738 = vmatmul.f32.gmra.mxu0 %v720
        %v739 = vpop.f32.mrf.mxu0
        %v740 = vadd.f32 0.0, %v739
        %741 = vdwg.mxu0
        %743 = vrot.lane.b32.xlu0 %v740, 8
        %v744 = vpop.permute.xlu0 %743
        %vm746 = vcmask 130112
        %747 = vst.msk [vmem:[#allocation2] sm:$0xff] %vm746, %v744
        %v748 = vadd.f32 %v638, %v714
        %749 = vrot.lane.b32.xlu0 %v531, 112
        %v750 = vpop.permute.xlu0 %749
        %751 = vrot.lane.b32.xlu0 %v558, 112
        %v752 = vpop.permute.xlu0 %751
        %v753 = vsel %vm588, %v750, 0
        %v755 = vsel %vm588, %v752, 0
        %757 = vmatpush.xpose.msra.mxu0 0.0
        %758 = vmatpush.xpose.msra.mxu0 0.0
        %759 = vmatpush.xpose.msra.mxu0 0.0
        %760 = vmatpush.xpose.msra.mxu0 0.0
        %761 = vmatpush.xpose.msra.mxu0 0.0
        %762 = vmatpush.xpose.msra.mxu0 0.0
        %763 = vmatpush.xpose.msra.mxu0 0.0
        %764 = vmatpush.xpose.msra.mxu0 0.0
        %765 = vmatpush.xpose.msra.mxu0 0.0
        %766 = vmatpush.xpose.msra.mxu0 0.0
        %767 = vmatpush.xpose.msra.mxu0 0.0
        %768 = vmatpush.xpose.msra.mxu0 0.0
        %769 = vmatpush.xpose.msra.mxu0 0.0
        %770 = vmatpush.xpose.msra.mxu0 0.0
        %771 = vmatpush.xpose.msra.mxu0 0.0
        %772 = vmatpush.xpose.msra.mxu0 %v755
        %773 = vmatmul.f32.gmra.mxu0 %v753
        %v774 = vpop.f32.mrf.mxu0
        %v775 = vadd.f32 0.0, %v774
        %776 = vdwg.mxu0
        %v777 = vsel %vm588, %v775, -inf
        %778 = vmax.xlane.f32.xlu0 %v777
        %v779 = vpop.xlane.xlu0 %778
        %v780 = vsub.f32 %v775, %v779
        %v781 = vmul.f32 %v780, 1.442695
        %v782 = vpow.pop %v781
        %v783 = vsel %vm588, %v782, 0.0
        %784 = vadd.xlane.f32.xlu0 %v783
        %v785 = vpop.xlane.xlu0 %784
        %v786 = vrcp.pop %v785
        %v787 = vmul.f32 %v785, %v786
        %v788 = vsub.f32 1.0, %v787
        %v789 = vmul.f32 %v786, %v788
        %v790 = vadd.f32 %v786, %v789
        %vm791 = vweird.f32 %v785
        %vm792 = vweird.f32 %v786
        %vm793 = vmor %vm791, %vm792
        %v794 = vsel %vm793, %v786, %v790
        %v795 = vand.u32 2147483647, %v785
        %vm796 = vcmp.eq.f32.partialorder %v795, 8.507059e+37
        %v797 = vand.u32 %v785, 2147483648
        %v798 = vor.u32 1.1754944e-38, %v797
        %v799 = vsel %vm796, %v798, %v794
        %v800 = vmul.f32 %v782, %v799
        %801 = vrot.lane.b32.xlu0 %v586, 112
        %v802 = vpop.permute.xlu0 %801
        %v805 = vsel %vm588, %v800, 0
        %807 = vmatpush.msra.mxu0 0.0
        %808 = vmatpush.msra.mxu0 0.0
        %809 = vmatpush.msra.mxu0 0.0
        %810 = vmatpush.msra.mxu0 0.0
        %811 = vmatpush.msra.mxu0 0.0
        %812 = vmatpush.msra.mxu0 0.0
        %813 = vmatpush.msra.mxu0 0.0
        %814 = vmatpush.msra.mxu0 0.0
        %815 = vmatpush.msra.mxu0 0.0
        %816 = vmatpush.msra.mxu0 0.0
        %817 = vmatpush.msra.mxu0 0.0
        %818 = vmatpush.msra.mxu0 0.0
        %819 = vmatpush.msra.mxu0 0.0
        %820 = vmatpush.msra.mxu0 0.0
        %821 = vmatpush.msra.mxu0 0.0
        %822 = vmatpush.msra.mxu0 %v802
        %823 = vmatmul.f32.gmra.mxu0 %v805
        %v824 = vpop.f32.mrf.mxu0
        %v825 = vadd.f32 0.0, %v824
        %826 = vdwg.mxu0
        %828 = vrot.lane.b32.xlu0 %v825, 16
        %v829 = vpop.permute.xlu0 %828
        %vm831 = vcmask 195712
        %832 = vst.msk [vmem:[#allocation2] sm:$0xff] %vm831, %v829
        %v833 = vadd.f32 %v748, %v800
        %834 = vrot.lane.b32.xlu0 %v531, 104
        %v835 = vpop.permute.xlu0 %834
        %836 = vrot.lane.b32.xlu0 %v558, 104
        %v837 = vpop.permute.xlu0 %836
        %v838 = vsel %vm588, %v835, 0
        %v840 = vsel %vm588, %v837, 0
        %842 = vmatpush.xpose.msra.mxu0 0.0
        %843 = vmatpush.xpose.msra.mxu0 0.0
        %844 = vmatpush.xpose.msra.mxu0 0.0
        %845 = vmatpush.xpose.msra.mxu0 0.0
        %846 = vmatpush.xpose.msra.mxu0 0.0
        %847 = vmatpush.xpose.msra.mxu0 0.0
        %848 = vmatpush.xpose.msra.mxu0 0.0
        %849 = vmatpush.xpose.msra.mxu0 0.0
        %850 = vmatpush.xpose.msra.mxu0 0.0
        %851 = vmatpush.xpose.msra.mxu0 0.0
        %852 = vmatpush.xpose.msra.mxu0 0.0
        %853 = vmatpush.xpose.msra.mxu0 0.0
        %854 = vmatpush.xpose.msra.mxu0 0.0
        %855 = vmatpush.xpose.msra.mxu0 0.0
        %856 = vmatpush.xpose.msra.mxu0 0.0
        %857 = vmatpush.xpose.msra.mxu0 %v840
        %858 = vmatmul.f32.gmra.mxu0 %v838
        %v859 = vpop.f32.mrf.mxu0
        %v860 = vadd.f32 0.0, %v859
        %861 = vdwg.mxu0
        %v862 = vsel %vm588, %v860, -inf
        %863 = vmax.xlane.f32.xlu0 %v862
        %v864 = vpop.xlane.xlu0 %863
        %v865 = vsub.f32 %v860, %v864
        %v866 = vmul.f32 %v865, 1.442695
        %v867 = vpow.pop %v866
        %v868 = vsel %vm588, %v867, 0.0
        %869 = vadd.xlane.f32.xlu0 %v868
        %v870 = vpop.xlane.xlu0 %869
        %v871 = vrcp.pop %v870
        %v872 = vmul.f32 %v870, %v871
        %v873 = vsub.f32 1.0, %v872
        %v874 = vmul.f32 %v871, %v873
        %v875 = vadd.f32 %v871, %v874
        %vm876 = vweird.f32 %v870
        %vm877 = vweird.f32 %v871
        %vm878 = vmor %vm876, %vm877
        %v879 = vsel %vm878, %v871, %v875
        %v880 = vand.u32 2147483647, %v870
        %vm881 = vcmp.eq.f32.partialorder %v880, 8.507059e+37
        %v882 = vand.u32 %v870, 2147483648
        %v883 = vor.u32 1.1754944e-38, %v882
        %v884 = vsel %vm881, %v883, %v879
        %v885 = vmul.f32 %v867, %v884
        %886 = vrot.lane.b32.xlu0 %v586, 104
        %v887 = vpop.permute.xlu0 %886
        %v890 = vsel %vm588, %v885, 0
        %892 = vmatpush.msra.mxu0 0.0
        %893 = vmatpush.msra.mxu0 0.0
        %894 = vmatpush.msra.mxu0 0.0
        %895 = vmatpush.msra.mxu0 0.0
        %896 = vmatpush.msra.mxu0 0.0
        %897 = vmatpush.msra.mxu0 0.0
        %898 = vmatpush.msra.mxu0 0.0
        %899 = vmatpush.msra.mxu0 0.0
        %900 = vmatpush.msra.mxu0 0.0
        %901 = vmatpush.msra.mxu0 0.0
        %902 = vmatpush.msra.mxu0 0.0
        %903 = vmatpush.msra.mxu0 0.0
        %904 = vmatpush.msra.mxu0 0.0
        %905 = vmatpush.msra.mxu0 0.0
        %906 = vmatpush.msra.mxu0 0.0
        %907 = vmatpush.msra.mxu0 %v887
        %908 = vmatmul.f32.gmra.mxu0 %v890
        %v909 = vpop.f32.mrf.mxu0
        %v910 = vadd.f32 0.0, %v909
        %911 = vdwg.mxu0
        %913 = vrot.lane.b32.xlu0 %v910, 24
        %v914 = vpop.permute.xlu0 %913
        %vm916 = vcmask 261312
        %917 = vst.msk [vmem:[#allocation2] sm:$0xff] %vm916, %v914
        %v918 = vadd.f32 %v833, %v885
        %v919 = vld [vmem:[#allocation2] sm:$0xff]
        %v920 = vld [vmem:[#allocation14] sm:$0xff]
        %v921 = vld [vmem:[#allocation14 + $0x8] sm:$0xff]
        %v922 = vld [vmem:[#allocation14 + $0x10] sm:$0xff]
        %v923 = vld [vmem:[#allocation14 + $0x18] sm:$0xff]
        %v924 = vld [vmem:[%s7] sm:$0x1]
        %v926 = vperm.slane %v924, 0
        %v929 = vsel %vm507, %v919, 0
        %931 = vmatpush.msra.mxu0 0.0
        %932 = vmatpush.msra.mxu0 0.0
        %933 = vmatpush.msra.mxu0 0.0
        %934 = vmatpush.msra.mxu0 0.0
        %935 = vmatpush.msra.mxu0 0.0
        %936 = vmatpush.msra.mxu0 0.0
        %937 = vmatpush.msra.mxu0 0.0
        %938 = vmatpush.msra.mxu0 0.0
        %939 = vmatpush.msra.mxu0 0.0
        %940 = vmatpush.msra.mxu0 0.0
        %941 = vmatpush.msra.mxu0 0.0
        %942 = vmatpush.msra.mxu0 0.0
        %943 = vmatpush.msra.mxu0 %v923
        %944 = vmatpush.msra.mxu0 %v922
        %945 = vmatpush.msra.mxu0 %v921
        %946 = vmatpush.msra.mxu0 %v920
        %947 = vmatmul.f32.gmra.mxu0 %v929
        %v948 = vpop.f32.mrf.mxu0
        %v949 = vadd.f32 %v926, %v948
        %950 = vdwg.mxu0
        %951 = vst.msk [vmem:[%s494] sm:$0xff] %vm507, %v949
        %v952 = vmul.f32 %v918, 0.25
        %953 = vst.msk [vmem:[%s501] sm:$0xff] %vm588, %v952
        %s954 = sand.u32 %s226, 1
        %s955 = scalar_lea.sflag [#allocation5], %s954
        %s956 = sand.u32 %s226, 1
        %s957 = smul.addr %s956, 8
        %s958 = scalar_lea.vmem [#allocation15], %s957
        %s959 = sand.u32 %s252, 1
        %s960 = scalar_lea.sflag [#allocation17], %s959
        %s961 = sand.u32 %s252, 1
        %s962 = smul.addr %s961, 8
        %s963 = scalar_lea.vmem [#allocation16], %s962
        // Predicated region
        $region81: #{tpu_custom_call.1} parent=51 // pred_check
          %p964 = pneg %p236
        $region82: #{tpu_custom_call.1} parent=51 // pred_check_branch
          %966 = sbr.rel (%p964) target = $region84
        $region83: #{tpu_custom_call.1} parent=51 // pred_region
          %968 = vsyncadd %s955, 0
          %s969 = smul.addr %s35, 8
          %s970 = scalar_lea.hbm %s8, %s969
          %s972 = sshll.u32 %s958, 4
          %s973 = int_to_ptr.vmem [resolvable:$true] %s972
          %s974 = sshll.u32 %s970, 4
          %s975 = int_to_ptr.hbm [resolvable:$true] %s974
          %977 = dma.vmem_to_hbm [thread:$0]  %s973, 128, %s975, %s955
        $region84: #{tpu_custom_call.1} parent=51 // pred_fallthru
          _
        // Predicated region
        $region85: #{tpu_custom_call.1} parent=51 // pred_check
          %p978 = pneg %p262
        $region86: #{tpu_custom_call.1} parent=51 // pred_check_branch
          %980 = sbr.rel (%p978) target = $region88
        $region87: #{tpu_custom_call.1} parent=51 // pred_region
          %982 = vsyncadd %s960, 0
          %s983 = smul.addr %s35, 8
          %s984 = scalar_lea.hbm %s9, %s983
          %s986 = sshll.u32 %s963, 4
          %s987 = int_to_ptr.vmem [resolvable:$true] %s986
          %s988 = sshll.u32 %s984, 4
          %s989 = int_to_ptr.hbm [resolvable:$true] %s988
          %991 = dma.vmem_to_hbm [thread:$0]  %s987, 128, %s989, %s960
        $region88: #{tpu_custom_call.1} parent=51 // pred_fallthru
          _
      $region52: #{tpu_custom_call.1} parent=5 // pred_fallthru
        _
      %p992 = scmp.le.s32.totalorder 2, %s30
      // Predicated region
      $region89: #{tpu_custom_call.1} parent=5 // pred_check
        %p993 = pneg %p992
      $region90: #{tpu_custom_call.1} parent=5 // pred_check_branch
        %995 = sbr.rel (%p993) target = $region92
      $region91: #{tpu_custom_call.1} parent=5 // pred_region
        %s996 = ssub.s32 %s30, 2
        // Predicated region
        $region93: #{tpu_custom_call.1} parent=91 // pred_check
          %p997 = pneg %p242
        $region94: #{tpu_custom_call.1} parent=91 // pred_check_branch
          %999 = sbr.rel (%p997) target = $region96
        $region95: #{tpu_custom_call.1} parent=91 // pred_region
          %s1000 = sand.u32 %s227, 1
          %s1001 = scalar_lea.sflag [#allocation5], %s1000
          %s1002 = sand.u32 %s227, 1
          %s1003 = smul.addr %s1002, 8
          %s1004 = scalar_lea.vmem [#allocation15], %s1003
          %1006 = dma.done %s1001, 128
        $region96: #{tpu_custom_call.1} parent=91 // pred_fallthru
          _
        // Predicated region
        $region97: #{tpu_custom_call.1} parent=91 // pred_check
          %p1007 = pneg %p268
        $region98: #{tpu_custom_call.1} parent=91 // pred_check_branch
          %1009 = sbr.rel (%p1007) target = $region100
        $region99: #{tpu_custom_call.1} parent=91 // pred_region
          %s1010 = sand.u32 %s253, 1
          %s1011 = scalar_lea.sflag [#allocation17], %s1010
          %s1012 = sand.u32 %s253, 1
          %s1013 = smul.addr %s1012, 8
          %s1014 = scalar_lea.vmem [#allocation16], %s1013
          %1016 = dma.done %s1011, 128
        $region100: #{tpu_custom_call.1} parent=91 // pred_fallthru
          _
      $region92: #{tpu_custom_call.1} parent=5 // pred_fallthru
        _
    $region6: #{tpu_custom_call.1} parent=1 // loop_footer
      %s34 = sadd.s32 1, %s30
    $region7: #{tpu_custom_call.1} parent=1 // loop_footer_branch
      %29 = sbr.rel target = $region3
    $region8: #{tpu_custom_call.1} parent=1 // loop_exit
      _
    %1017 = vsyncpa [#allocation4], 1
    %s1018 = scalar_lea.sflag [#allocation4], 1
    %1019 = vsyncpa %s1018, 1
    %1020 = vsyncpa [#allocation7], 1
    %s1021 = scalar_lea.sflag [#allocation7], 1
    %1022 = vsyncpa %s1021, 1
    %1023 = vsyncpa [#allocation10], 1
    %1024 = vsyncpa [#allocation13], 1
    %1025 = vsyncpa [#allocation5], 1
    %s1026 = scalar_lea.sflag [#allocation5], 1
    %1027 = vsyncpa %s1026, 1
    %1028 = vsyncpa [#allocation17], 1
    %s1029 = scalar_lea.sflag [#allocation17], 1
    %1030 = vsyncpa %s1029, 1

</llo_original>
